<compile_context>
chip_gen: v5e
topology: v5e:2x2
jax: 0.10.0
libtpu: 0.0.40
codegen_flags: <defaults>
</compile_context>

<pallas_src>
import math
import functools

import numpy as np
import jax
import jax.numpy as jnp
from jax import lax
from jax.experimental import pallas as pl
from jax.experimental.pallas import tpu as pltpu

NEG_INF = -1e30
LN_EPS = 1e-5


# ----------------------------- device / feature probes ----------------------

def _default_vmem_limit():
    try:
        cap = int(pltpu.get_tpu_info().vmem_capacity_bytes)
    except Exception:
        cap = 64 * 1024 * 1024            # conservative (v7x physical VMEM)
    # leave headroom below physical VMEM; cap at ~100 MiB on v5e/v6e (128 MiB phys)
    return min((cap * 3) // 4, 100 * 1024 * 1024)


_VMEM_LIMIT = _default_vmem_limit()


def _cparams(*sem):
    return pltpu.CompilerParams(dimension_semantics=tuple(sem),
                                vmem_limit_bytes=_VMEM_LIMIT)


def _probe_kernel(x_ref, o_ref):
    o_ref[...] = x_ref[...] + 1.0


def _probe_buffered_support():
    """End-to-end probe: does this Pallas build support pipeline_mode=Buffered(1)?"""
    try:
        spec = pl.BlockSpec((8, 128), lambda i: (0, 0), pipeline_mode=pl.Buffered(1))
        fn = pl.pallas_call(
            _probe_kernel,
            out_shape=jax.ShapeDtypeStruct((8, 128), jnp.float32),
            grid=(1,),
            in_specs=[spec],
            out_specs=pl.BlockSpec((8, 128), lambda i: (0, 0)),
        )
        jax.block_until_ready(fn(jnp.zeros((8, 128), jnp.float32)))
        return True
    except Exception:
        return False


_HAS_BUFFERED1 = _probe_buffered_support()


def _const_spec(shape, index_map):
    """BlockSpec for operands whose block never changes across the grid (weights, LN
    params): single-buffer them when supported to halve their VMEM residency."""
    if _HAS_BUFFERED1:
        return pl.BlockSpec(shape, index_map, pipeline_mode=pl.Buffered(1))
    return pl.BlockSpec(shape, index_map)


# ----------------------------- in-kernel helpers ----------------------------

def _gelu_new(x):
    # NewGELU: 0.5*x*(1+tanh(sqrt(2/pi)*(x+0.044715*x^3)))
    return 0.5 * x * (1.0 + jnp.tanh(math.sqrt(2.0 / math.pi) * (x + 0.044715 * x * x * x)))


def _layernorm(x, g, b, eps=LN_EPS):
    mean = jnp.mean(x, axis=-1, keepdims=True)
    var = jnp.mean((x - mean) ** 2, axis=-1, keepdims=True)
    return (x - mean) * lax.rsqrt(var + eps) * g + b


def _rope(x, cos, sin, half):
    # rotate_half(x) = concat(-x[..., half:], x[..., :half]); pure VPU slicing/concat,
    # no (C,C) rotation matmul.
    rot = jnp.concatenate([-x[:, half:], x[:, :half]], axis=-1)
    return x * cos + rot * sin


# ----------------------------- Pallas kernels -------------------------------

def _ln_kernel(x_ref, g_ref, b_ref, o_ref):
    o_ref[...] = _layernorm(x_ref[...], g_ref[...], b_ref[...])


def _ln_residual_kernel(x_ref, r_ref, g_ref, b_ref, o_ref):
    # encoder ln_f fused with the "hidden_states += residual" step
    o_ref[...] = _layernorm(x_ref[...], g_ref[...], b_ref[...]) + r_ref[...]


def _ln_linear_kernel(x_ref, g_ref, b_ref, w_ref, wb_ref, o_ref, h_sc):
    # LayerNorm fused into the following Linear.  LN is computed ONCE per row tile
    # (at the first output-column tile) into a bf16 VMEM scratch and reused for every
    # N tile (j axis is "arbitrary", innermost).
    @pl.when(pl.program_id(1) == 0)
    def _():
        h_sc[...] = _layernorm(x_ref[...], g_ref[...], b_ref[...]).astype(jnp.bfloat16)

    o_ref[...] = jnp.dot(h_sc[...], w_ref[...],
                         preferred_element_type=jnp.float32) + wb_ref[...]


def _mlp_block_kernel(x_ref, g_ref, b_ref, wfc_ref, bfc_ref, wpr_ref, bpr_ref, o_ref):
    # x + c_proj(NewGELU(c_fc(LN2(x))))  — one kernel, residual fused into the store.
    # Weights arrive pre-cast to bf16; activations cast at the matmul inputs only.
    x = x_ref[...]
    h = _layernorm(x, g_ref[...], b_ref[...])
    a = jnp.dot(h.astype(jnp.bfloat16), wfc_ref[...],
                preferred_element_type=jnp.float32) + bfc_ref[...]
    a = _gelu_new(a)
    y = jnp.dot(a.astype(jnp.bfloat16), wpr_ref[...],
                preferred_element_type=jnp.float32) + bpr_ref[...]
    o_ref[...] = x + y
    # TODO(synk): at very large C (>=2048) add an N-tile axis on c_fc and a K-accum
    # ("arbitrary") axis with a VMEM accumulator on c_proj to bound weight residency.


def _qkv_rope_kernel(x_ref, g_ref, b_ref, w3_ref, b3_ref, cos_ref, sin_ref,
                     q_ref, k_ref, v_ref, *, n_head, head_dim):
    # LN1 -> Q/K/V projections -> per-head RoPE -> bf16 head-major (H, T, D) outputs.
    x = x_ref[0]                                   # (tt, C)
    h = _layernorm(x, g_ref[...], b_ref[...])
    hb = h.astype(jnp.bfloat16)
    q = jnp.dot(hb, w3_ref[0], preferred_element_type=jnp.float32) + b3_ref[0]
    k = jnp.dot(hb, w3_ref[1], preferred_element_type=jnp.float32) + b3_ref[1]
    v = jnp.dot(hb, w3_ref[2], preferred_element_type=jnp.float32) + b3_ref[2]
    cos = cos_ref[...]                             # (tt, D)
    sin = sin_ref[...]
    half = head_dim // 2
    for hd in range(n_head):
        s0 = hd * head_dim
        qh = q[:, s0:s0 + head_dim]
        kh = k[:, s0:s0 + head_dim]
        q_ref[0, hd] = _rope(qh, cos, sin, half).astype(jnp.bfloat16)
        k_ref[0, hd] = _rope(kh, cos, sin, half).astype(jnp.bfloat16)
        v_ref[0, hd] = v[:, s0:s0 + head_dim].astype(jnp.bfloat16)


def _flash_attn_kernel(q_ref, k_ref, v_ref, x_ref, wp_ref, bp_ref, o_ref,
                       m_sc, l_sc, acc_sc, *,
                       n_head, head_dim, causal, prefix_len, tq, tk):
    # Head-batched flash attention over KV tiles + output projection + residual add.
    kv = pl.program_id(2)

    @pl.when(kv == 0)
    def _():
        m_sc[...] = jnp.full(m_sc.shape, NEG_INF, jnp.float32)
        l_sc[...] = jnp.zeros(l_sc.shape, jnp.float32)
        acc_sc[...] = jnp.zeros(acc_sc.shape, jnp.float32)

    q = q_ref[0]                                   # (H, tq, D) bf16
    k = k_ref[0]                                   # (H, tk, D) bf16
    v = v_ref[0]
    s = jnp.einsum('hqd,hkd->hqk', q, k,
                   preferred_element_type=jnp.float32) * (1.0 / math.sqrt(head_dim))

    allowed = None
    if causal:
        # matches PyTorch: mask = tril(ones); mask[:, :thoughts_len] = 1
        row = pl.program_id(1) * tq + lax.broadcasted_iota(jnp.int32, (tq, tk), 0)
        col = kv * tk + lax.broadcasted_iota(jnp.int32, (tq, tk), 1)
        allowed = (col <= row) | (col < prefix_len)
        s = s + jnp.where(allowed, 0.0, NEG_INF)

    m_prev = m_sc[...]                             # (H, tq, 1)
    m_new = jnp.maximum(m_prev, jnp.max(s, axis=-1, keepdims=True))
    alpha = jnp.exp(m_prev - m_new)
    p = jnp.exp(s - m_new)
    if causal:
        p = jnp.where(allowed, p, 0.0)             # robust even for fully-masked tiles
    l_sc[...] = alpha * l_sc[...] + jnp.sum(p, axis=-1, keepdims=True)
    acc_sc[...] = alpha * acc_sc[...] + jnp.einsum(
        'hqk,hkd->hqd', p.astype(v.dtype), v, preferred_element_type=jnp.float32)
    m_sc[...] = m_new

    @pl.when(kv == pl.num_programs(2) - 1)
    def _():
        ctx = acc_sc[...] * pl.reciprocal(l_sc[...], approx=True)   # (H, tq, D) f32
        # output projection: sum_h ctx[h] @ Wproj[h*D:(h+1)*D, :]  (== concat(ctx) @ W)
        y = jnp.zeros((ctx.shape[1], wp_ref.shape[1]), jnp.float32)
        for hd in range(n_head):
            y = y + jnp.dot(ctx[hd].astype(jnp.bfloat16),
                            wp_ref[hd * head_dim:(hd + 1) * head_dim, :],
                            preferred_element_type=jnp.float32)
        o_ref[0] = x_ref[0] + y + bp_ref[...]


# ----------------------------- pallas_call wrappers --------------------------

def _row_tile(M, cap):
    return M if M <= cap else cap


def _seq_tile(T, cap):
    if T <= cap:
        return T
    # TODO(synk): ragged T (T % cap != 0) falls back to a single full-T tile.
    return cap if T % cap == 0 else T


def pallas_layernorm(x2d, g, b):
    M, C = x2d.shape
    tm = _row_tile(M, 1024)
    row = lambda i: (i, 0)
    rep = lambda i: (0, 0)
    return pl.pallas_call(
        _ln_kernel,
        out_shape=jax.ShapeDtypeStruct((M, C), jnp.float32),
        grid=(pl.cdiv(M, tm),),
        in_specs=[pl.BlockSpec((tm, C), row),
                  _const_spec((1, C), rep),
                  _const_spec((1, C), rep)],
        out_specs=pl.BlockSpec((tm, C), row),
        compiler_params=_cparams("parallel"),
    )(x2d, g, b)


def pallas_layernorm_residual(x2d, res2d, g, b):
    M, C = x2d.shape
    tm = _row_tile(M, 1024)
    row = lambda i: (i, 0)
    rep = lambda i: (0, 0)
    return pl.pallas_call(
        _ln_residual_kernel,
        out_shape=jax.ShapeDtypeStruct((M, C), jnp.float32),
        grid=(pl.cdiv(M, tm),),
        in_specs=[pl.BlockSpec((tm, C), row),
                  pl.BlockSpec((tm, C), row),
                  _const_spec((1, C), rep),
                  _const_spec((1, C), rep)],
        out_specs=pl.BlockSpec((tm, C), row),
        compiler_params=_cparams("parallel"),
    )(x2d, res2d, g, b)


def pallas_ln_linear(x2d, g, b, w, wb):
    """LayerNorm(x) @ w + wb, tiled over rows (M, parallel) and columns (N, arbitrary);
    LN cached in VMEM scratch across N tiles."""
    M, K = x2d.shape
    N = w.shape[1]
    tm = _row_tile(M, 512)
    tn = N if N <= 1024 else 1024
    return pl.pallas_call(
        _ln_linear_kernel,
        out_shape=jax.ShapeDtypeStruct((M, N), jnp.float32),
        grid=(pl.cdiv(M, tm), pl.cdiv(N, tn)),
        in_specs=[pl.BlockSpec((tm, K), lambda i, j: (i, 0)),
                  _const_spec((1, K), lambda i, j: (0, 0)),
                  _const_spec((1, K), lambda i, j: (0, 0)),
                  pl.BlockSpec((K, tn), lambda i, j: (0, j)),
                  pl.BlockSpec((1, tn), lambda i, j: (0, j))],
        out_specs=pl.BlockSpec((tm, tn), lambda i, j: (i, j)),
        scratch_shapes=[pltpu.VMEM((tm, K), jnp.bfloat16)],
        compiler_params=_cparams("parallel", "arbitrary"),
    )(x2d, g, b, w, wb)


def pallas_mlp_block(x2d, p):
    M, C = x2d.shape
    H4 = p["wfc"].shape[1]
    tm = _row_tile(M, 512)
    row = lambda i: (i, 0)
    rep = lambda i: (0, 0)
    return pl.pallas_call(
        _mlp_block_kernel,
        out_shape=jax.ShapeDtypeStruct((M, C), jnp.float32),
        grid=(pl.cdiv(M, tm),),
        in_specs=[pl.BlockSpec((tm, C), row),
                  _const_spec((1, C), rep),
                  _const_spec((1, C), rep),
                  _const_spec((C, H4), rep),
                  _const_spec((1, H4), rep),
                  _const_spec((H4, C), rep),
                  _const_spec((1, C), rep)],
        out_specs=pl.BlockSpec((tm, C), row),
        compiler_params=_cparams("parallel"),
    )(x2d, p["ln2_g"], p["ln2_b"], p["wfc"], p["bfc"], p["wpr"], p["bpr"])


def pallas_qkv_rope(x, p, cos, sin, n_head):
    B, T, C = x.shape
    D = C // n_head
    tt = _seq_tile(T, 256)
    nt = T // tt
    kernel = functools.partial(_qkv_rope_kernel, n_head=n_head, head_dim=D)
    c2 = lambda bb, ti: (0, 0)
    c3 = lambda bb, ti: (0, 0, 0)
    out_sh = jax.ShapeDtypeStruct((B, n_head, T, D), jnp.bfloat16)
    out_spec = pl.BlockSpec((1, n_head, tt, D), lambda bb, ti: (bb, 0, ti, 0))
    return pl.pallas_call(
        kernel,
        out_shape=(out_sh, out_sh, out_sh),
        grid=(B, nt),
        in_specs=[pl.BlockSpec((1, tt, C), lambda bb, ti: (bb, ti, 0)),
                  _const_spec((1, C), c2),
                  _const_spec((1, C), c2),
                  _const_spec((3, C, C), c3),
                  _const_spec((3, 1, C), c3),
                  pl.BlockSpec((tt, D), lambda bb, ti: (ti, 0)),
                  pl.BlockSpec((tt, D), lambda bb, ti: (ti, 0))],
        out_specs=(out_spec, out_spec, out_spec),
        compiler_params=_cparams("parallel", "parallel"),
    )(x, p["ln1_g"], p["ln1_b"], p["w3"], p["b3"], cos, sin)


def pallas_attn_proj(q, k, v, x, wproj, bproj, prefix_len=None):
    B, H, T, D = q.shape
    C = H * D
    causal = prefix_len is not None
    tq = _seq_tile(T, 256)
    tk = _seq_tile(T, 512)
    nq, nk = T // tq, T // tk
    kernel = functools.partial(
        _flash_attn_kernel, n_head=H, head_dim=D, causal=causal,
        prefix_len=int(prefix_len) if causal else 0, tq=tq, tk=tk)
    qspec = pl.BlockSpec((1, H, tq, D), lambda bb, qi, kv: (bb, 0, qi, 0))
    kvspec = pl.BlockSpec((1, H, tk, D), lambda bb, qi, kv: (bb, 0, kv, 0))
    return pl.pallas_call(
        kernel,
        out_shape=jax.ShapeDtypeStruct((B, T, C), jnp.float32),
        grid=(B, nq, nk),
        in_specs=[qspec, kvspec, kvspec,
                  pl.BlockSpec((1, tq, C), lambda bb, qi, kv: (bb, qi, 0)),
                  _const_spec((C, C), lambda bb, qi, kv: (0, 0)),
                  _const_spec((1, C), lambda bb, qi, kv: (0, 0))],
        out_specs=pl.BlockSpec((1, tq, C), lambda bb, qi, kv: (bb, qi, 0)),
        scratch_shapes=[pltpu.VMEM((H, tq, 1), jnp.float32),
                        pltpu.VMEM((H, tq, 1), jnp.float32),
                        pltpu.VMEM((H, tq, D), jnp.float32)],
        compiler_params=_cparams("parallel", "parallel", "arbitrary"),
    )(q, k, v, x, wproj, bproj)


# ----------------------------- RoPE cache (host side, lru-cached) -----------

@functools.lru_cache(maxsize=None)
def rope_cache(dim, T, base=10000.0):
    inv_freq = 1.0 / (base ** (np.arange(0, dim, 2, dtype=np.float32) / dim))
    t = np.arange(T, dtype=np.float32)
    freqs = np.einsum("i,j->ij", t, inv_freq)
    emb = np.concatenate([freqs, freqs], axis=-1)        # (T, dim)
    return jnp.asarray(np.cos(emb)), jnp.asarray(np.sin(emb))


# ----------------------------- parameter init / prep ------------------------

def init_linear(key, din, dout, scale=0.02):
    kw, kb = jax.random.split(key)
    return {"w": jax.random.normal(kw, (din, dout), jnp.float32) * scale,
            "b": jax.random.normal(kb, (dout,), jnp.float32) * scale}


def init_layernorm(d):
    return {"g": jnp.ones((d,), jnp.float32), "b": jnp.zeros((d,), jnp.float32)}


def init_block(key, d_model):
    keys = jax.random.split(key, 4)
    return {"ln1": init_layernorm(d_model),
            "attn": init_linear(keys[0], d_model, 3 * d_model),
            "proj": init_linear(keys[1], d_model, d_model),
            "ln2": init_layernorm(d_model),
            "fc": init_linear(keys[2], d_model, 4 * d_model),
            "fc_proj": init_linear(keys[3], 4 * d_model, d_model)}


def init_embedding(key, vocab, d_model):
    w = jax.random.normal(key, (vocab, d_model), jnp.float32) * 0.02
    w = w.at[0].set(0.0)                                  # padding_idx=0 -> zero row
    return {"w": w, "ln": init_layernorm(d_model)}


def init_ccot(key, cfg):
    Ce, Cd, V = cfg["encoder_hidden_size"], cfg["decoder_hidden_size"], cfg["vocab_size"]
    n_enc, n_dec = cfg["num_encoder_layers"], cfg["num_decoder_layers"]
    keys = jax.random.split(key, 4 + n_enc + n_dec)
    return {"enc_embed": init_embedding(keys[0], V, Ce),
            "dec_embed": init_embedding(keys[1], V, Cd),
            "norm": init_layernorm(Ce),
            "intermediate": init_linear(keys[2], Ce, Cd),
            "lm_head": init_linear(keys[3], Cd, V),
            "encoder_layers": [init_block(keys[4 + i], Ce) for i in range(n_enc)],
            "encoder_lnf": init_layernorm(Ce),
            "decoder_layers": [init_block(keys[4 + n_enc + i], Cd) for i in range(n_dec)],
            "decoder_lnf": init_layernorm(Cd)}


def prepare_block(p, C):
    # One-time host prep: QKV weight stack + bf16 weight casts (hoisted out of forward).
    w = p["attn"]["w"]                                    # (C, 3C)
    w3 = jnp.stack([w[:, :C], w[:, C:2 * C], w[:, 2 * C:]], axis=0).astype(jnp.bfloat16)
    b3 = p["attn"]["b"].reshape(3, 1, C)
    H4 = p["fc"]["w"].shape[1]
    return {"ln1_g": p["ln1"]["g"].reshape(1, C), "ln1_b": p["ln1"]["b"].reshape(1, C),
            "w3": w3, "b3": b3,
            "wproj": p["proj"]["w"].astype(jnp.bfloat16),
            "bproj": p["proj"]["b"].reshape(1, C),
            "ln2_g": p["ln2"]["g"].reshape(1, C), "ln2_b": p["ln2"]["b"].reshape(1, C),
            "wfc": p["fc"]["w"].astype(jnp.bfloat16), "bfc": p["fc"]["b"].reshape(1, H4),
            "wpr": p["fc_proj"]["w"].astype(jnp.bfloat16),
            "bpr": p["fc_proj"]["b"].reshape(1, C)}


def prepare_params(params, cfg):
    Ce, Cd, V = cfg["encoder_hidden_size"], cfg["decoder_hidden_size"], cfg["vocab_size"]

    def emb(p, C):
        return {"w": p["w"],
                "ln_g": p["ln"]["g"].reshape(1, C), "ln_b": p["ln"]["b"].reshape(1, C)}

    return {"enc_embed": emb(params["enc_embed"], Ce),
            "dec_embed": emb(params["dec_embed"], Cd),
            "norm_g": params["norm"]["g"].reshape(1, Ce),
            "norm_b": params["norm"]["b"].reshape(1, Ce),
            "w_int": params["intermediate"]["w"].astype(jnp.bfloat16),
            "b_int": params["intermediate"]["b"].reshape(1, Cd),
            "lm_w": params["lm_head"]["w"].astype(jnp.bfloat16),
            "lm_b": params["lm_head"]["b"].reshape(1, V),
            "encoder_layers": [prepare_block(p, Ce) for p in params["encoder_layers"]],
            "encoder_lnf_g": params["encoder_lnf"]["g"].reshape(1, Ce),
            "encoder_lnf_b": params["encoder_lnf"]["b"].reshape(1, Ce),
            "decoder_layers": [prepare_block(p, Cd) for p in params["decoder_layers"]],
            "decoder_lnf_g": params["decoder_lnf"]["g"].reshape(1, Cd),
            "decoder_lnf_b": params["decoder_lnf"]["b"].reshape(1, Cd)}


# ----------------------------- model forward --------------------------------

def embed_forward(p, ids):
    # TODO(synk): the token-embedding gather stays in XLA; a scalar-prefetch DMA-gather
    # kernel is not worth it at this vocab size.  The following LayerNorm is Pallas.
    emb = p["w"][ids]                                     # (B, T, C)
    B, T, C = emb.shape
    out = pallas_layernorm(emb.reshape(B * T, C), p["ln_g"], p["ln_b"])
    return out.reshape(B, T, C)


def block_forward(p, x, cos, sin, n_head, prefix_len=None):
    B, T, C = x.shape
    q, k, v = pallas_qkv_rope(x, p, cos, sin, n_head)
    x = pallas_attn_proj(q, k, v, x, p["wproj"], p["bproj"], prefix_len=prefix_len)
    x2d = pallas_mlp_block(x.reshape(B * T, C), p)
    return x2d.reshape(B, T, C)


def ccot_forward(params, cfg, input_ids, answer_ids, num_loops=0, num_contemplation_tokens=0):
    Ce, Cd = cfg["encoder_hidden_size"], cfg["decoder_hidden_size"]
    Henc, Hdec = cfg["encoder_head"], cfg["decoder_head"]
    V = cfg["vocab_size"]

    # ----- encode -----
    h = embed_forward(params["enc_embed"], input_ids)               # (B, T_in, Ce)
    B, T_in, _ = h.shape
    h = jnp.concatenate(
        [h, jnp.zeros((B, num_contemplation_tokens, Ce), jnp.float32)], axis=1)
    Tenc = T_in + num_contemplation_tokens
    residual = h
    enc_cos, enc_sin = rope_cache(Ce // Henc, Tenc)
    for _ in range(num_loops):
        x = h
        for lp in params["encoder_layers"]:
            x = block_forward(lp, x, enc_cos, enc_sin, Henc, prefix_len=None)
        # encoder ln_f fused with "hidden_states += residual"
        x2d = pallas_layernorm_residual(
            x.reshape(B * Tenc, Ce), residual.reshape(B * Tenc, Ce),
            params["encoder_lnf_g"], params["encoder_lnf_b"])
        h = x2d.reshape(B, Tenc, Ce)

    # ----- norm + intermediate projection (fused LN -> Linear) -----
    h2d = pallas_ln_linear(h.reshape(B * Tenc, Ce),
                           params["norm_g"], params["norm_b"],
                           params["w_int"], params["b_int"])
    h = h2d.reshape(B, Tenc, Cd)

    # ----- decode -----
    thoughts_len = Tenc
    ans = embed_forward(params["dec_embed"], answer_ids)            # (B, T_ans, Cd)
    seq = jnp.concatenate([h, ans], axis=1)
    S = seq.shape[1]
    dec_cos, dec_sin = rope_cache(Cd // Hdec, S)
    x = seq
    for lp in params["decoder_layers"]:
        x = block_forward(lp, x, dec_cos, dec_sin, Hdec, prefix_len=thoughts_len)
    # decoder ln_f fused with lm_head
    logits2d = pallas_ln_linear(x.reshape(B * S, Cd),
                                params["decoder_lnf_g"], params["decoder_lnf_b"],
                                params["lm_w"], params["lm_b"])
    return logits2d.reshape(B, S, V)


# ----------------------------- main ------------------------------------------

if __name__ == "__main__":
    # small synthetic CCoTConfig
    cfg = dict(
        eos_token_id=2,
        num_encoder_layers=2,
        num_decoder_layers=1,
        encoder_hidden_size=32,
        decoder_hidden_size=32,
        vocab_size=64,
        encoder_head=4,
        decoder_head=4,
        encoder_maxlen=64,
        decoder_maxlen=64,
    )

    key = jax.random.PRNGKey(0)
    pkey, ikey, akey = jax.random.split(key, 3)
    raw_params = init_ccot(pkey, cfg)
    params = prepare_params(raw_params, cfg)   # one-time host prep (bf16 weights, QKV stack)

    B, T_in, T_ans = 2, 8, 6
    num_loops, num_contemplation_tokens = 1, 2
    input_ids = jax.random.randint(ikey, (B, T_in), 1, cfg["vocab_size"], dtype=jnp.int32)
    answer_ids = jax.random.randint(akey, (B, T_ans), 1, cfg["vocab_size"], dtype=jnp.int32)

    logits = ccot_forward(params, cfg, input_ids, answer_ids,
                          num_loops=num_loops,
                          num_contemplation_tokens=num_contemplation_tokens)
    logits = jax.block_until_ready(logits)

    expected_shape = (B, T_in + num_contemplation_tokens + T_ans, cfg["vocab_size"])
    assert logits.shape == expected_shape, (logits.shape, expected_shape)
    assert bool(jnp.all(jnp.isfinite(logits)))
    print("KERNEL_OK")
</pallas_src>

<mosaic_0001>
module attributes {stable_mosaic.version = 11 : i64} {
  func.func @_probe_kernel(%arg0: i32, %arg1: memref<8x128xf32, #tpu.memory_space<vmem>>, %arg2: memref<8x128xf32, #tpu.memory_space<vmem>>) attributes {dimension_semantics = [#tpu.dimension_semantics<arbitrary>], iteration_bounds = array<i64: 1>, scalar_prefetch = 0 : i64, scratch_operands = 0 : i64, tpu.core_type = #tpu.core_type<tc>, window_params = [{pipeline_mode = #tpu.pipeline_mode<synchronous>, transform_indices = @transform_0, window_bounds = array<i64: 8, 128>}, {pipeline_mode = #tpu.pipeline_mode<synchronous>, transform_indices = @transform_1, window_bounds = array<i64: 8, 128>}]} {
    %c0 = arith.constant 0 : index
    %c0_0 = arith.constant 0 : index
    %0 = vector.load %arg1[%c0, %c0_0] : memref<8x128xf32, #tpu.memory_space<vmem>>, vector<8x128xf32>
    %cst = arith.constant 1.000000e+00 : f32
    %1 = vector.broadcast %cst : f32 to vector<8x128xf32>
    %2 = arith.addf %0, %1 : vector<8x128xf32>
    %c0_1 = arith.constant 0 : index
    %c0_2 = arith.constant 0 : index
    %3 = vector.load %arg2[%c0_1, %c0_2] : memref<8x128xf32, #tpu.memory_space<vmem>>, vector<8x128xf32>
    tpu.vector_store %arg2[%c0_1, %c0_2], %2 {strides = array<i32>} : memref<8x128xf32, #tpu.memory_space<vmem>>, vector<8x128xf32>,
    return
  }
  func.func @transform_0(%arg0: i32) -> (i32, i32) {
    %c0_i32 = arith.constant 0 : i32
    %c0_i32_0 = arith.constant 0 : i32
    %c0_i32_1 = arith.constant 0 : i32
    return %c0_i32, %c0_i32_0 : i32, i32
  }
  func.func @transform_1(%arg0: i32) -> (i32, i32) {
    %c0_i32 = arith.constant 0 : i32
    %c0_i32_0 = arith.constant 0 : i32
    %c0_i32_1 = arith.constant 0 : i32
    return %c0_i32, %c0_i32_0 : i32, i32
  }
}

module attributes {stable_mosaic.version = 11 : i64} {
  func.func @_ln_kernel(%arg0: i32, %arg1: memref<16x32xf32, #tpu.memory_space<vmem>>, %arg2: memref<1x32xf32, #tpu.memory_space<vmem>>, %arg3: memref<1x32xf32, #tpu.memory_space<vmem>>, %arg4: memref<16x32xf32, #tpu.memory_space<vmem>>) attributes {dimension_semantics = [#tpu.dimension_semantics<parallel>], iteration_bounds = array<i64: 1>, scalar_prefetch = 0 : i64, scratch_operands = 0 : i64, tpu.core_type = #tpu.core_type<tc>, window_params = [{transform_indices = @transform_0, window_bounds = array<i64: 16, 32>}, {pipeline_mode = #tpu.pipeline_mode<synchronous>, transform_indices = @transform_1, window_bounds = array<i64: 1, 32>}, {pipeline_mode = #tpu.pipeline_mode<synchronous>, transform_indices = @transform_2, window_bounds = array<i64: 1, 32>}, {transform_indices = @transform_3, window_bounds = array<i64: 16, 32>}]} {
    %c0 = arith.constant 0 : index
    %c0_0 = arith.constant 0 : index
    %0 = vector.load %arg1[%c0, %c0_0] : memref<16x32xf32, #tpu.memory_space<vmem>>, vector<16x32xf32>
    %c0_1 = arith.constant 0 : index
    %c0_2 = arith.constant 0 : index
    %1 = vector.load %arg2[%c0_1, %c0_2] : memref<1x32xf32, #tpu.memory_space<vmem>>, vector<1x32xf32>
    %c0_3 = arith.constant 0 : index
    %c0_4 = arith.constant 0 : index
    %2 = vector.load %arg3[%c0_3, %c0_4] : memref<1x32xf32, #tpu.memory_space<vmem>>, vector<1x32xf32>
    %cst = arith.constant dense<0.000000e+00> : vector<16xf32>
    %3 = vector.multi_reduction <add>, %0, %cst [1] : vector<16x32xf32> to vector<16xf32>
    %4 = vector.shape_cast %3 : vector<16xf32> to vector<16x1xf32>
    %cst_5 = arith.constant 3.200000e+01 : f32
    %5 = vector.broadcast %cst_5 : f32 to vector<16x1xf32>
    %6 = arith.divf %4, %5 : vector<16x1xf32>
    %7 = vector.broadcast %6 : vector<16x1xf32> to vector<16x32xf32>
    %8 = arith.subf %0, %7 : vector<16x32xf32>
    %9 = arith.mulf %8, %8 : vector<16x32xf32>
    %cst_6 = arith.constant dense<0.000000e+00> : vector<16xf32>
    %10 = vector.multi_reduction <add>, %9, %cst_6 [1] : vector<16x32xf32> to vector<16xf32>
    %11 = vector.shape_cast %10 : vector<16xf32> to vector<16x1xf32>
    %cst_7 = arith.constant 3.200000e+01 : f32
    %12 = vector.broadcast %cst_7 : f32 to vector<16x1xf32>
    %13 = arith.divf %11, %12 : vector<16x1xf32>
    %14 = vector.broadcast %6 : vector<16x1xf32> to vector<16x32xf32>
    %15 = arith.subf %0, %14 : vector<16x32xf32>
    %cst_8 = arith.constant 9.99999974E-6 : f32
    %16 = vector.broadcast %cst_8 : f32 to vector<16x1xf32>
    %17 = arith.addf %13, %16 : vector<16x1xf32>
    %18 = math.rsqrt %17 : vector<16x1xf32>
    %19 = vector.broadcast %18 : vector<16x1xf32> to vector<16x32xf32>
    %20 = arith.mulf %15, %19 : vector<16x32xf32>
    %21 = vector.broadcast %1 : vector<1x32xf32> to vector<16x32xf32>
    %22 = arith.mulf %20, %21 : vector<16x32xf32>
    %23 = vector.broadcast %2 : vector<1x32xf32> to vector<16x32xf32>
    %24 = arith.addf %22, %23 : vector<16x32xf32>
    %c0_9 = arith.constant 0 : index
    %c0_10 = arith.constant 0 : index
    %25 = vector.load %arg4[%c0_9, %c0_10] : memref<16x32xf32, #tpu.memory_space<vmem>>, vector<16x32xf32>
    tpu.vector_store %arg4[%c0_9, %c0_10], %24 {strides = array<i32>} : memref<16x32xf32, #tpu.memory_space<vmem>>, vector<16x32xf32>,
    return
  }
  func.func @transform_0(%arg0: i32) -> (i32, i32) {
    %c0_i32 = arith.constant 0 : i32
    %c0_i32_0 = arith.constant 0 : i32
    return %arg0, %c0_i32 : i32, i32
  }
  func.func @transform_1(%arg0: i32) -> (i32, i32) {
    %c0_i32 = arith.constant 0 : i32
    %c0_i32_0 = arith.constant 0 : i32
    %c0_i32_1 = arith.constant 0 : i32
    return %c0_i32, %c0_i32_0 : i32, i32
  }
  func.func @transform_2(%arg0: i32) -> (i32, i32) {
    %c0_i32 = arith.constant 0 : i32
    %c0_i32_0 = arith.constant 0 : i32
    %c0_i32_1 = arith.constant 0 : i32
    return %c0_i32, %c0_i32_0 : i32, i32
  }
  func.func @transform_3(%arg0: i32) -> (i32, i32) {
    %c0_i32 = arith.constant 0 : i32
    %c0_i32_0 = arith.constant 0 : i32
    return %arg0, %c0_i32 : i32, i32
  }
}

</mosaic_0001>

<llo_original>
// kernel: tpu_custom_call.1
$region0: #{tpu_custom_call.1}
  #allocation0 [shape = 'u32[]', space=smem, size = 0x4, offset = 0x4, fixed_abs, tag = 'smem constant byte address 0x4 - core index']
  #allocation1 [shape = 'u32[72,128]{1,0:T(1,128)}', space=vmem, size = 0x9000, scoped, tag = 'internal scratch']
  %s0 = inlined_call_operand.hbm [shape: f32[8,128], index: 0, kind: input, shape index: {}]
  %s1 = inlined_call_operand.hbm [shape: f32[8,128], index: 1, kind: output, shape index: {}]
  %s2 = sld [smem:[#allocation0]]
  $region18: #{tpu_custom_call.1} parent=0
    _
  %s4 = ssub.s32 1, %s2
  %s5 = scalar_select 0, %s4, %s2
  $region1: #{tpu_custom_call.1} parent=0
    #allocation2 [shape = 'u8[4096]{0}', space=vmem, size = 0x1000, scoped, tag = 'input window, operand 0, single buffered']
    #allocation3 [shape = 's32[1]{0}', space=sflag, size = 0x4, scoped, tag = 'scoped memory for tpu_custom_call.1']
    #allocation4 [shape = 's32[1]{0}', space=sflag, size = 0x4, scoped, tag = 'scoped memory for tpu_custom_call.1']
    #allocation5 [shape = 'u8[4096]{0}', space=vmem, size = 0x1000, scoped, tag = 'output window, operand 0, single buffered']
    %6 = vsyncpa [#allocation3], 0
    %7 = vsyncpa [#allocation4], 0
    // Predicated region
    $region2: #{tpu_custom_call.1} parent=1 // pred_check
      _
    $region3: #{tpu_custom_call.1} parent=1 // pred_check_branch
      %9 = sbr.rel (0) target = $region5
    $region4: #{tpu_custom_call.1} parent=1 // pred_region
      %11 = vsyncadd [#allocation3], 0
      %s13 = sshll.u32 %s0, 4
      %s14 = int_to_ptr.hbm [resolvable:$true] %s13
      %s15 = sshll.u32 [#allocation2], 4
      %s16 = int_to_ptr.vmem [resolvable:$true] %s15
      %18 = dma.hbm_to_vmem [thread:$0]  %s14, 128, %s16, [#allocation3]
    $region5: #{tpu_custom_call.1} parent=1 // pred_fallthru
      _
    // Predicated region
    $region6: #{tpu_custom_call.1} parent=1 // pred_check
      _
    $region7: #{tpu_custom_call.1} parent=1 // pred_check_branch
      %20 = sbr.rel (0) target = $region9
    $region8: #{tpu_custom_call.1} parent=1 // pred_region
      %22 = dma.done [#allocation3], 128
    $region9: #{tpu_custom_call.1} parent=1 // pred_fallthru
      _
    %v23 = vld [vmem:[#allocation2] sm:$0xff]
    %v24 = vadd.f32 %v23, 1.0
    %25 = vst [vmem:[#allocation5] sm:$0xff] %v24
    // Predicated region
    $region10: #{tpu_custom_call.1} parent=1 // pred_check
      _
    $region11: #{tpu_custom_call.1} parent=1 // pred_check_branch
      %27 = sbr.rel (0) target = $region13
    $region12: #{tpu_custom_call.1} parent=1 // pred_region
      %29 = vsyncadd [#allocation4], 0
      %s31 = sshll.u32 [#allocation5], 4
      %s32 = int_to_ptr.vmem [resolvable:$true] %s31
      %s33 = sshll.u32 %s1, 4
      %s34 = int_to_ptr.hbm [resolvable:$true] %s33
      %36 = dma.vmem_to_hbm [thread:$0]  %s32, 128, %s34, [#allocation4]
    $region13: #{tpu_custom_call.1} parent=1 // pred_fallthru
      _
    // Predicated region
    $region14: #{tpu_custom_call.1} parent=1 // pred_check
      _
    $region15: #{tpu_custom_call.1} parent=1 // pred_check_branch
      %38 = sbr.rel (0) target = $region17
    $region16: #{tpu_custom_call.1} parent=1 // pred_region
      %40 = dma.done [#allocation4], 128
    $region17: #{tpu_custom_call.1} parent=1 // pred_fallthru
      _
    %41 = vsyncpa [#allocation3], 1
    %42 = vsyncpa [#allocation4], 1

// kernel: tpu_custom_call.1
$region0: #{tpu_custom_call.1}
  #allocation0 [shape = 'u32[]', space=smem, size = 0x4, offset = 0x4, fixed_abs, tag = 'smem constant byte address 0x4 - core index']
  #allocation1 [shape = 'u32[72,128]{1,0:T(1,128)}', space=vmem, size = 0x9000, scoped, tag = 'internal scratch']
  %s0 = inlined_call_operand.hbm [shape: f32[16,32], index: 0, kind: input, shape index: {}]
  %s1 = inlined_call_operand.hbm [shape: f32[1,32], index: 1, kind: input, shape index: {}]
  %s2 = inlined_call_operand.vmem [shape: f32[1,32], index: 2, kind: input, shape index: {}]
  %s3 = inlined_call_operand.hbm [shape: f32[16,32], index: 3, kind: output, shape index: {}]
  %s4 = sld [smem:[#allocation0]]
  $region30: #{tpu_custom_call.1} parent=0
    _
  %s6 = ssub.s32 1, %s4
  %s7 = scalar_select 0, %s6, %s4
  $region1: #{tpu_custom_call.1} parent=0
    #allocation2 [shape = 'u8[8192]{0}', space=vmem, size = 0x2000, scoped, tag = 'input window, operand 0, single buffered']
    #allocation3 [shape = 's32[1]{0}', space=sflag, size = 0x4, scoped, tag = 'scoped memory for tpu_custom_call.1']
    #allocation4 [shape = 's32[1]{0}', space=sflag, size = 0x4, scoped, tag = 'scoped memory for tpu_custom_call.1']
    #allocation5 [shape = 'u8[512]{0}', space=vmem, size = 0x400, scoped, tag = 'input window, operand 1, single buffered']
    #allocation6 [shape = 's32[1]{0}', space=sflag, size = 0x4, scoped, tag = 'scoped memory for tpu_custom_call.1']
    #allocation7 [shape = 'u8[8192]{0}', space=vmem, size = 0x2000, scoped, tag = 'output window, operand 0, single buffered']
    %8 = vsyncpa [#allocation3], 0
    %9 = vsyncpa [#allocation6], 0
    %10 = vsyncpa [#allocation4], 0
    // Predicated region
    $region2: #{tpu_custom_call.1} parent=1 // pred_check
      _
    $region3: #{tpu_custom_call.1} parent=1 // pred_check_branch
      %12 = sbr.rel (0) target = $region5
    $region4: #{tpu_custom_call.1} parent=1 // pred_region
      %14 = vsyncadd [#allocation3], 0
      %s15 = sshll.u32 %s0, 4
      %s16 = int_to_ptr.hbm [resolvable:$true] %s15
      %s17 = sshll.u32 [#allocation2], 4
      %s18 = int_to_ptr.vmem [resolvable:$true] %s17
      %23 = dma.hbm_to_vmem [thread:$0]  %s16, 256, %s18, [#allocation3], 128, 128, 8
    $region5: #{tpu_custom_call.1} parent=1 // pred_fallthru
      _
    // Predicated region
    $region6: #{tpu_custom_call.1} parent=1 // pred_check
      _
    $region7: #{tpu_custom_call.1} parent=1 // pred_check_branch
      %25 = sbr.rel (0) target = $region9
    $region8: #{tpu_custom_call.1} parent=1 // pred_region
      %27 = vsyncadd [#allocation6], 0
      %s29 = sshll.u32 %s1, 4
      %s30 = int_to_ptr.hbm [resolvable:$true] %s29
      %s31 = sshll.u32 [#allocation5], 4
      %s32 = int_to_ptr.vmem [resolvable:$true] %s31
      %34 = dma.hbm_to_vmem [thread:$0]  %s30, 16, %s32, [#allocation6]
    $region9: #{tpu_custom_call.1} parent=1 // pred_fallthru
      _
    // Predicated region
    $region10: #{tpu_custom_call.1} parent=1 // pred_check
      _
    $region11: #{tpu_custom_call.1} parent=1 // pred_check_branch
      %36 = sbr.rel (0) target = $region13
    $region12: #{tpu_custom_call.1} parent=1 // pred_region
      _
    $region13: #{tpu_custom_call.1} parent=1 // pred_fallthru
      _
    // Predicated region
    $region14: #{tpu_custom_call.1} parent=1 // pred_check
      _
    $region15: #{tpu_custom_call.1} parent=1 // pred_check_branch
      %38 = sbr.rel (0) target = $region17
    $region16: #{tpu_custom_call.1} parent=1 // pred_region
      %40 = dma.done [#allocation3], 256
    $region17: #{tpu_custom_call.1} parent=1 // pred_fallthru
      _
    // Predicated region
    $region18: #{tpu_custom_call.1} parent=1 // pred_check
      _
    $region19: #{tpu_custom_call.1} parent=1 // pred_check_branch
      %42 = sbr.rel (0) target = $region21
    $region20: #{tpu_custom_call.1} parent=1 // pred_region
      %44 = dma.done [#allocation6], 16
    $region21: #{tpu_custom_call.1} parent=1 // pred_fallthru
      _
    %v45 = vld [vmem:[#allocation2] sm:$0xff]
    %v46 = vld [vmem:[#allocation2 + $0x8] sm:$0xff]
    %v47 = vld [vmem:[#allocation5] sm:$0x1]
    %v48 = vld [vmem:[%s2] sm:$0x1]
    %vm49 = vcmask 261120
    %v50 = vsel %vm49, %v45, 0.0
    %51 = vadd.xlane.f32.xlu0 %v50
    %v52 = vpop.xlane.xlu0 %51
    %v53 = vsel %vm49, %v46, 0.0
    %54 = vadd.xlane.f32.xlu0 %v53
    %v55 = vpop.xlane.xlu0 %54
    %v56 = vrcp.pop 32.0
    %v57 = vmul.f32 32.0, %v56
    %v58 = vsub.f32 1.0, %v57
    %v59 = vmul.f32 %v56, %v58
    %v60 = vadd.f32 %v56, %v59
    %vm61 = vweird.f32 %v56
    %v62 = vsel %vm61, %v56, %v60
    %v63 = vmul.f32 %v52, %v62
    %v64 = vmul.f32 %v55, %v62
    %v65 = vsub.f32 %v45, %v63
    %v66 = vsub.f32 %v46, %v64
    %v67 = vmul.f32 %v65, %v65
    %v68 = vmul.f32 %v66, %v66
    %v69 = vsel %vm49, %v67, 0.0
    %70 = vadd.xlane.f32.xlu0 %v69
    %v71 = vpop.xlane.xlu0 %70
    %v72 = vsel %vm49, %v68, 0.0
    %73 = vadd.xlane.f32.xlu0 %v72
    %v74 = vpop.xlane.xlu0 %73
    %v75 = vmul.f32 %v71, %v62
    %v76 = vmul.f32 %v74, %v62
    %v77 = vadd.f32 %v75, 1e-05
    %v78 = vadd.f32 %v76, 1e-05
    %v79 = vrsqrt.pop %v77
    %v80 = vmul.f32 %v79, %v77
    %v81 = vmul.f32 %v80, %v79
    %v82 = vmul.f32 0.5, %v81
    %v83 = vsub.f32 1.5, %v82
    %v84 = vmul.f32 %v79, %v83
    %vm85 = vweird.f32 %v77
    %vm86 = vweird.f32 %v79
    %vm87 = vmor %vm85, %vm86
    %v88 = vsel %vm87, %v79, %v84
    %v89 = vrsqrt.pop %v78
    %v90 = vmul.f32 %v89, %v78
    %v91 = vmul.f32 %v90, %v89
    %v92 = vmul.f32 0.5, %v91
    %v93 = vsub.f32 1.5, %v92
    %v94 = vmul.f32 %v89, %v93
    %vm95 = vweird.f32 %v78
    %vm96 = vweird.f32 %v89
    %vm97 = vmor %vm95, %vm96
    %v98 = vsel %vm97, %v89, %v94
    %v99 = vmul.f32 %v65, %v88
    %v100 = vmul.f32 %v66, %v98
    %v102 = vperm.slane %v47, 0
    %v104 = vmul.f32 %v99, %v102
    %v105 = vmul.f32 %v100, %v102
    %v107 = vperm.slane %v48, 0
    %v109 = vadd.f32 %v104, %v107
    %v110 = vadd.f32 %v105, %v107
    %111 = vst.msk [vmem:[#allocation7] sm:$0xff] %vm49, %v109
    %112 = vst.msk [vmem:[#allocation7 + $0x8] sm:$0xff] %vm49, %v110
    // Predicated region
    $region22: #{tpu_custom_call.1} parent=1 // pred_check
      _
    $region23: #{tpu_custom_call.1} parent=1 // pred_check_branch
      %114 = sbr.rel (0) target = $region25
    $region24: #{tpu_custom_call.1} parent=1 // pred_region
      %116 = vsyncadd [#allocation4], 0
      %s117 = sshll.u32 [#allocation7], 4
      %s118 = int_to_ptr.vmem [resolvable:$true] %s117
      %s119 = sshll.u32 %s3, 4
      %s120 = int_to_ptr.hbm [resolvable:$true] %s119
      %125 = dma.vmem_to_hbm [thread:$0]  %s118, 256, %s120, [#allocation4], 128, 128, 8
    $region25: #{tpu_custom_call.1} parent=1 // pred_fallthru
      _
    // Predicated region
    $region26: #{tpu_custom_call.1} parent=1 // pred_check
      _
    $region27: #{tpu_custom_call.1} parent=1 // pred_check_branch
      %127 = sbr.rel (0) target = $region29
    $region28: #{tpu_custom_call.1} parent=1 // pred_region
      %129 = dma.done [#allocation4], 256
    $region29: #{tpu_custom_call.1} parent=1 // pred_fallthru
      _
    %130 = vsyncpa [#allocation3], 1
    %131 = vsyncpa [#allocation6], 1
    %132 = vsyncpa [#allocation4], 1

</llo_original>
